<compile_context>
chip_gen: v7x
topology: tpu7x:2x2x1
jax: 0.10.0
libtpu: 0.0.40
codegen_flags: <defaults>
</compile_context>

<pallas_src>
import functools

import jax
import jax.numpy as jnp
from jax.experimental import pallas as pl
from jax.experimental.pallas import tpu as pltpu


# ----------------------------------------------------------------------------
# Fused Pallas kernel
# ----------------------------------------------------------------------------
def _fused_basic_block_kernel(x_ref, w1_ref, b1_ref, w2_ref, b2_ref, m_ref,
                              o_ref, *, H, W, K):
    p = K // 2
    HW = H * W
    S = p * W + p                       # max |lane shift| of any conv tap

    x = x_ref[0]                        # (Cin, H*W)   lane axis = flat spatial
    masks = m_ref[...]                  # (K, 1, H*W)  row-wrap masks per kw

    def conv(inp, w_ref):
        """'same' KxK conv as a single MXU matmul (lane-shift im2col)."""
        c = inp.shape[0]
        z = jnp.zeros((c, S), jnp.float32)
        xp = jnp.concatenate([z, inp, z], axis=1)      # zero halo, (c, HW+2S)
        taps = []
        for kh in range(K):
            for kw in range(K):
                off = (kh - p) * W + (kw - p)
                t = xp[:, S + off: S + off + HW]       # shifted image (c, HW)
                if kw != p:                            # mask row-wrap columns
                    t = t * masks[kw]
                taps.append(t)
        patches = jnp.concatenate(taps, axis=0)        # (K*K*c, HW) im2col
        return jnp.dot(w_ref[...], patches,
                       preferred_element_type=jnp.float32)   # (Cout, HW)

    # conv1 + bn1 (scale folded into weights) + relu   -- stays on-chip
    h = jnp.maximum(conv(x, w1_ref) + b1_ref[...], 0.0)
    # conv2 + bn2 + identity residual + relu
    out = jnp.maximum(conv(h, w2_ref) + b2_ref[...] + x, 0.0)
    o_ref[0] = out.astype(o_ref.dtype)                 # lane-dense store


# ----------------------------------------------------------------------------
# Wrapper: BN folding, im2col weight repack, BlockSpecs
# ----------------------------------------------------------------------------
@jax.jit
def my_basic_block_forward(x_nchw, params, eps=1e-5):
    """MyBasicBlock forward (stride=1, downsample=None, BN in eval mode)."""
    B, C, H, W = x_nchw.shape
    w1, w2 = params["w1"], params["w2"]         # OIHW (PyTorch), bias-free
    K = w1.shape[-1]
    planes = w1.shape[0]
    assert w1.shape == (planes, C, K, K) and w2.shape == (planes, planes, K, K)
    assert planes == C, "identity residual requires inplanes == planes"
    p = K // 2
    HW = H * W

    # Fold eval-mode BatchNorm: scale into the conv weights, shift into a bias.
    s1 = params["bn1_gamma"] * jax.lax.rsqrt(params["bn1_var"] + eps)
    b1 = params["bn1_beta"] - params["bn1_mean"] * s1
    s2 = params["bn2_gamma"] * jax.lax.rsqrt(params["bn2_var"] + eps)
    b2 = params["bn2_beta"] - params["bn2_mean"] * s2
    # (Cout,Cin,K,K)*scale -> im2col matrix (Cout, K*K*Cin); row order (kh,kw,ci)
    # matches the in-kernel tap stacking order.
    w1m = jnp.transpose(w1 * s1[:, None, None, None],
                        (0, 2, 3, 1)).reshape(planes, K * K * C)
    w2m = jnp.transpose(w2 * s2[:, None, None, None],
                        (0, 2, 3, 1)).reshape(planes, K * K * planes)

    # Row-wrap masks for the lane-shift im2col (one per horizontal tap offset).
    col = jnp.arange(HW, dtype=jnp.int32) % W
    masks = jnp.stack(
        [((col + (kw - p) >= 0) & (col + (kw - p) < W)).astype(jnp.float32)
         for kw in range(K)], axis=0).reshape(K, 1, HW)

    x_flat = x_nchw.reshape(B, C, HW)   # free contiguous reshape (stays NCHW)

    kernel = functools.partial(_fused_basic_block_kernel, H=H, W=W, K=K)
    out = pl.pallas_call(
        kernel,
        out_shape=jax.ShapeDtypeStruct((B, planes, HW), jnp.float32),
        grid_spec=pltpu.PrefetchScalarGridSpec(
            num_scalar_prefetch=0,
            grid=(B,),
            in_specs=[
                pl.BlockSpec((1, C, HW), lambda b: (b, 0, 0)),            # x
                pl.BlockSpec((planes, K * K * C), lambda b: (0, 0)),      # w1
                pl.BlockSpec((planes, 1), lambda b: (0, 0)),              # b1
                pl.BlockSpec((planes, K * K * planes), lambda b: (0, 0)), # w2
                pl.BlockSpec((planes, 1), lambda b: (0, 0)),              # b2
                pl.BlockSpec((K, 1, HW), lambda b: (0, 0, 0)),            # masks
            ],
            out_specs=pl.BlockSpec((1, planes, HW), lambda b: (b, 0, 0)),
        ),
        compiler_params=pltpu.CompilerParams(
            dimension_semantics=("parallel",)),
    )(x_flat, w1m, b1.reshape(planes, 1).astype(jnp.float32),
      w2m, b2.reshape(planes, 1).astype(jnp.float32), masks)
    return out.reshape(B, planes, H, W)


# ----------------------------------------------------------------------------
# Pure-JAX reference (un-folded BN, matches the PyTorch module semantics)
# ----------------------------------------------------------------------------
def _reference_forward(x, params, eps=1e-5):
    def conv(y, w):
        p = w.shape[-1] // 2
        return jax.lax.conv_general_dilated(
            y, w, window_strides=(1, 1), padding=[(p, p), (p, p)],
            dimension_numbers=("NCHW", "OIHW", "NCHW"))

    def bn(y, g, b, m, v):
        inv = jax.lax.rsqrt(v + eps)
        return ((y - m[None, :, None, None]) * (g * inv)[None, :, None, None]
                + b[None, :, None, None])

    out = conv(x, params["w1"])
    out = bn(out, params["bn1_gamma"], params["bn1_beta"],
             params["bn1_mean"], params["bn1_var"])
    out = jnp.maximum(out, 0.0)
    out = conv(out, params["w2"])
    out = bn(out, params["bn2_gamma"], params["bn2_beta"],
             params["bn2_mean"], params["bn2_var"])
    return jnp.maximum(out + x, 0.0)


# ----------------------------------------------------------------------------
# Main
# ----------------------------------------------------------------------------
if __name__ == "__main__":
    B, C, H, W, K = 2, 4, 16, 16, 3     # inplanes = planes = 4, kernel_size = 3

    key = jax.random.PRNGKey(0)
    ks = jax.random.split(key, 11)
    std = (2.0 / (C * K * K)) ** 0.5
    params = {
        "w1": std * jax.random.normal(ks[0], (C, C, K, K), jnp.float32),
        "w2": std * jax.random.normal(ks[1], (C, C, K, K), jnp.float32),
        "bn1_gamma": 1.0 + 0.1 * jax.random.normal(ks[2], (C,), jnp.float32),
        "bn1_beta": 0.1 * jax.random.normal(ks[3], (C,), jnp.float32),
        "bn1_mean": 0.1 * jax.random.normal(ks[4], (C,), jnp.float32),
        "bn1_var": jnp.abs(jax.random.normal(ks[5], (C,), jnp.float32)) + 0.5,
        "bn2_gamma": 1.0 + 0.1 * jax.random.normal(ks[6], (C,), jnp.float32),
        "bn2_beta": 0.1 * jax.random.normal(ks[7], (C,), jnp.float32),
        "bn2_mean": 0.1 * jax.random.normal(ks[8], (C,), jnp.float32),
        "bn2_var": jnp.abs(jax.random.normal(ks[9], (C,), jnp.float32)) + 0.5,
    }
    x = jax.random.normal(ks[10], (B, C, H, W), jnp.float32)

    out = jax.block_until_ready(my_basic_block_forward(x, params))
    ref = jax.block_until_ready(_reference_forward(x, params))

    assert out.shape == (B, C, H, W)
    err = float(jnp.max(jnp.abs(out - ref)))
    assert err < 1e-4, f"max abs error {err}"
    print("KERNEL_OK")
</pallas_src>

<mosaic_0001>
module attributes {stable_mosaic.version = 11 : i64} {
  func.func @_fused_basic_block_kernel(%arg0: i32, %arg1: memref<1x4x256xf32, #tpu.memory_space<vmem>>, %arg2: memref<4x36xf32, #tpu.memory_space<vmem>>, %arg3: memref<4x1xf32, #tpu.memory_space<vmem>>, %arg4: memref<4x36xf32, #tpu.memory_space<vmem>>, %arg5: memref<4x1xf32, #tpu.memory_space<vmem>>, %arg6: memref<3x1x256xf32, #tpu.memory_space<vmem>>, %arg7: memref<1x4x256xf32, #tpu.memory_space<vmem>>) attributes {dimension_semantics = [#tpu.dimension_semantics<parallel>], iteration_bounds = array<i64: 2>, scalar_prefetch = 0 : i64, scratch_operands = 0 : i64, tpu.core_type = #tpu.core_type<tc>, window_params = [{transform_indices = @transform_0, window_bounds = array<i64: 1, 4, 256>}, {pipeline_mode = #tpu.pipeline_mode<synchronous>, transform_indices = @transform_1, window_bounds = array<i64: 4, 36>}, {pipeline_mode = #tpu.pipeline_mode<synchronous>, transform_indices = @transform_2, window_bounds = array<i64: 4, 1>}, {pipeline_mode = #tpu.pipeline_mode<synchronous>, transform_indices = @transform_3, window_bounds = array<i64: 4, 36>}, {pipeline_mode = #tpu.pipeline_mode<synchronous>, transform_indices = @transform_4, window_bounds = array<i64: 4, 1>}, {pipeline_mode = #tpu.pipeline_mode<synchronous>, transform_indices = @transform_5, window_bounds = array<i64: 3, 1, 256>}, {transform_indices = @transform_6, window_bounds = array<i64: 1, 4, 256>}]} {
    %c0 = arith.constant 0 : index
    %c0_0 = arith.constant 0 : index
    %c0_1 = arith.constant 0 : index
    %0 = vector.load %arg1[%c0, %c0_0, %c0_1] : memref<1x4x256xf32, #tpu.memory_space<vmem>>, vector<1x4x256xf32>
    %1 = vector.shape_cast %0 : vector<1x4x256xf32> to vector<4x256xf32>
    %c0_2 = arith.constant 0 : index
    %c0_3 = arith.constant 0 : index
    %c0_4 = arith.constant 0 : index
    %2 = vector.load %arg6[%c0_2, %c0_3, %c0_4] : memref<3x1x256xf32, #tpu.memory_space<vmem>>, vector<3x1x256xf32>
    %cst = arith.constant 0.000000e+00 : f32
    %3 = vector.broadcast %cst : f32 to vector<4x17xf32>
    %4 = tpu.concatenate %3, %1, %3 in 1 : vector<4x17xf32>, vector<4x256xf32>, vector<4x17xf32> -> vector<4x290xf32>
    %5 = vector.extract_strided_slice %4 {offsets = [0, 0], sizes = [4, 256], strides = [1, 1]} : vector<4x290xf32> to vector<4x256xf32>
    %6 = vector.extract_strided_slice %2 {offsets = [0, 0, 0], sizes = [1, 1, 256], strides = [1, 1, 1]} : vector<3x1x256xf32> to vector<1x1x256xf32>
    %7 = vector.shape_cast %6 : vector<1x1x256xf32> to vector<1x256xf32>
    %8 = vector.broadcast %7 : vector<1x256xf32> to vector<4x256xf32>
    %9 = arith.mulf %5, %8 : vector<4x256xf32>
    %10 = vector.extract_strided_slice %4 {offsets = [0, 1], sizes = [4, 256], strides = [1, 1]} : vector<4x290xf32> to vector<4x256xf32>
    %11 = vector.extract_strided_slice %4 {offsets = [0, 2], sizes = [4, 256], strides = [1, 1]} : vector<4x290xf32> to vector<4x256xf32>
    %12 = vector.extract_strided_slice %2 {offsets = [2, 0, 0], sizes = [1, 1, 256], strides = [1, 1, 1]} : vector<3x1x256xf32> to vector<1x1x256xf32>
    %13 = vector.shape_cast %12 : vector<1x1x256xf32> to vector<1x256xf32>
    %14 = vector.broadcast %13 : vector<1x256xf32> to vector<4x256xf32>
    %15 = arith.mulf %11, %14 : vector<4x256xf32>
    %16 = vector.extract_strided_slice %4 {offsets = [0, 16], sizes = [4, 256], strides = [1, 1]} : vector<4x290xf32> to vector<4x256xf32>
    %17 = vector.extract_strided_slice %2 {offsets = [0, 0, 0], sizes = [1, 1, 256], strides = [1, 1, 1]} : vector<3x1x256xf32> to vector<1x1x256xf32>
    %18 = vector.shape_cast %17 : vector<1x1x256xf32> to vector<1x256xf32>
    %19 = vector.broadcast %18 : vector<1x256xf32> to vector<4x256xf32>
    %20 = arith.mulf %16, %19 : vector<4x256xf32>
    %21 = vector.extract_strided_slice %4 {offsets = [0, 17], sizes = [4, 256], strides = [1, 1]} : vector<4x290xf32> to vector<4x256xf32>
    %22 = vector.extract_strided_slice %4 {offsets = [0, 18], sizes = [4, 256], strides = [1, 1]} : vector<4x290xf32> to vector<4x256xf32>
    %23 = vector.extract_strided_slice %2 {offsets = [2, 0, 0], sizes = [1, 1, 256], strides = [1, 1, 1]} : vector<3x1x256xf32> to vector<1x1x256xf32>
    %24 = vector.shape_cast %23 : vector<1x1x256xf32> to vector<1x256xf32>
    %25 = vector.broadcast %24 : vector<1x256xf32> to vector<4x256xf32>
    %26 = arith.mulf %22, %25 : vector<4x256xf32>
    %27 = vector.extract_strided_slice %4 {offsets = [0, 32], sizes = [4, 256], strides = [1, 1]} : vector<4x290xf32> to vector<4x256xf32>
    %28 = vector.extract_strided_slice %2 {offsets = [0, 0, 0], sizes = [1, 1, 256], strides = [1, 1, 1]} : vector<3x1x256xf32> to vector<1x1x256xf32>
    %29 = vector.shape_cast %28 : vector<1x1x256xf32> to vector<1x256xf32>
    %30 = vector.broadcast %29 : vector<1x256xf32> to vector<4x256xf32>
    %31 = arith.mulf %27, %30 : vector<4x256xf32>
    %32 = vector.extract_strided_slice %4 {offsets = [0, 33], sizes = [4, 256], strides = [1, 1]} : vector<4x290xf32> to vector<4x256xf32>
    %33 = vector.extract_strided_slice %4 {offsets = [0, 34], sizes = [4, 256], strides = [1, 1]} : vector<4x290xf32> to vector<4x256xf32>
    %34 = vector.extract_strided_slice %2 {offsets = [2, 0, 0], sizes = [1, 1, 256], strides = [1, 1, 1]} : vector<3x1x256xf32> to vector<1x1x256xf32>
    %35 = vector.shape_cast %34 : vector<1x1x256xf32> to vector<1x256xf32>
    %36 = vector.broadcast %35 : vector<1x256xf32> to vector<4x256xf32>
    %37 = arith.mulf %33, %36 : vector<4x256xf32>
    %38 = tpu.concatenate %9, %10, %15, %20, %21, %26, %31, %32, %37 in 0 : vector<4x256xf32>, vector<4x256xf32>, vector<4x256xf32>, vector<4x256xf32>, vector<4x256xf32>, vector<4x256xf32>, vector<4x256xf32>, vector<4x256xf32>, vector<4x256xf32> -> vector<36x256xf32>
    %c0_5 = arith.constant 0 : index
    %c0_6 = arith.constant 0 : index
    %39 = vector.load %arg2[%c0_5, %c0_6] : memref<4x36xf32, #tpu.memory_space<vmem>>, vector<4x36xf32>
    %cst_7 = arith.constant dense<0.000000e+00> : vector<4x256xf32>
    %40 = tpu.matmul %39, %38, %cst_7 {dimension_numbers = #tpu.dot_dimension_numbers<[1], [0], [0], [1], [0, 0, 1, 1], [], []>} : vector<4x36xf32>, vector<36x256xf32>, vector<4x256xf32> -> vector<4x256xf32>
    %c0_8 = arith.constant 0 : index
    %c0_9 = arith.constant 0 : index
    %41 = vector.load %arg3[%c0_8, %c0_9] : memref<4x1xf32, #tpu.memory_space<vmem>>, vector<4x1xf32>
    %42 = vector.broadcast %41 : vector<4x1xf32> to vector<4x256xf32>
    %43 = arith.addf %40, %42 : vector<4x256xf32>
    %cst_10 = arith.constant 0.000000e+00 : f32
    %44 = vector.broadcast %cst_10 : f32 to vector<4x256xf32>
    %45 = arith.maximumf %43, %44 : vector<4x256xf32>
    %cst_11 = arith.constant 0.000000e+00 : f32
    %46 = vector.broadcast %cst_11 : f32 to vector<4x17xf32>
    %47 = tpu.concatenate %46, %45, %46 in 1 : vector<4x17xf32>, vector<4x256xf32>, vector<4x17xf32> -> vector<4x290xf32>
    %48 = vector.extract_strided_slice %47 {offsets = [0, 0], sizes = [4, 256], strides = [1, 1]} : vector<4x290xf32> to vector<4x256xf32>
    %49 = vector.extract_strided_slice %2 {offsets = [0, 0, 0], sizes = [1, 1, 256], strides = [1, 1, 1]} : vector<3x1x256xf32> to vector<1x1x256xf32>
    %50 = vector.shape_cast %49 : vector<1x1x256xf32> to vector<1x256xf32>
    %51 = vector.broadcast %50 : vector<1x256xf32> to vector<4x256xf32>
    %52 = arith.mulf %48, %51 : vector<4x256xf32>
    %53 = vector.extract_strided_slice %47 {offsets = [0, 1], sizes = [4, 256], strides = [1, 1]} : vector<4x290xf32> to vector<4x256xf32>
    %54 = vector.extract_strided_slice %47 {offsets = [0, 2], sizes = [4, 256], strides = [1, 1]} : vector<4x290xf32> to vector<4x256xf32>
    %55 = vector.extract_strided_slice %2 {offsets = [2, 0, 0], sizes = [1, 1, 256], strides = [1, 1, 1]} : vector<3x1x256xf32> to vector<1x1x256xf32>
    %56 = vector.shape_cast %55 : vector<1x1x256xf32> to vector<1x256xf32>
    %57 = vector.broadcast %56 : vector<1x256xf32> to vector<4x256xf32>
    %58 = arith.mulf %54, %57 : vector<4x256xf32>
    %59 = vector.extract_strided_slice %47 {offsets = [0, 16], sizes = [4, 256], strides = [1, 1]} : vector<4x290xf32> to vector<4x256xf32>
    %60 = vector.extract_strided_slice %2 {offsets = [0, 0, 0], sizes = [1, 1, 256], strides = [1, 1, 1]} : vector<3x1x256xf32> to vector<1x1x256xf32>
    %61 = vector.shape_cast %60 : vector<1x1x256xf32> to vector<1x256xf32>
    %62 = vector.broadcast %61 : vector<1x256xf32> to vector<4x256xf32>
    %63 = arith.mulf %59, %62 : vector<4x256xf32>
    %64 = vector.extract_strided_slice %47 {offsets = [0, 17], sizes = [4, 256], strides = [1, 1]} : vector<4x290xf32> to vector<4x256xf32>
    %65 = vector.extract_strided_slice %47 {offsets = [0, 18], sizes = [4, 256], strides = [1, 1]} : vector<4x290xf32> to vector<4x256xf32>
    %66 = vector.extract_strided_slice %2 {offsets = [2, 0, 0], sizes = [1, 1, 256], strides = [1, 1, 1]} : vector<3x1x256xf32> to vector<1x1x256xf32>
    %67 = vector.shape_cast %66 : vector<1x1x256xf32> to vector<1x256xf32>
    %68 = vector.broadcast %67 : vector<1x256xf32> to vector<4x256xf32>
    %69 = arith.mulf %65, %68 : vector<4x256xf32>
    %70 = vector.extract_strided_slice %47 {offsets = [0, 32], sizes = [4, 256], strides = [1, 1]} : vector<4x290xf32> to vector<4x256xf32>
    %71 = vector.extract_strided_slice %2 {offsets = [0, 0, 0], sizes = [1, 1, 256], strides = [1, 1, 1]} : vector<3x1x256xf32> to vector<1x1x256xf32>
    %72 = vector.shape_cast %71 : vector<1x1x256xf32> to vector<1x256xf32>
    %73 = vector.broadcast %72 : vector<1x256xf32> to vector<4x256xf32>
    %74 = arith.mulf %70, %73 : vector<4x256xf32>
    %75 = vector.extract_strided_slice %47 {offsets = [0, 33], sizes = [4, 256], strides = [1, 1]} : vector<4x290xf32> to vector<4x256xf32>
    %76 = vector.extract_strided_slice %47 {offsets = [0, 34], sizes = [4, 256], strides = [1, 1]} : vector<4x290xf32> to vector<4x256xf32>
    %77 = vector.extract_strided_slice %2 {offsets = [2, 0, 0], sizes = [1, 1, 256], strides = [1, 1, 1]} : vector<3x1x256xf32> to vector<1x1x256xf32>
    %78 = vector.shape_cast %77 : vector<1x1x256xf32> to vector<1x256xf32>
    %79 = vector.broadcast %78 : vector<1x256xf32> to vector<4x256xf32>
    %80 = arith.mulf %76, %79 : vector<4x256xf32>
    %81 = tpu.concatenate %52, %53, %58, %63, %64, %69, %74, %75, %80 in 0 : vector<4x256xf32>, vector<4x256xf32>, vector<4x256xf32>, vector<4x256xf32>, vector<4x256xf32>, vector<4x256xf32>, vector<4x256xf32>, vector<4x256xf32>, vector<4x256xf32> -> vector<36x256xf32>
    %c0_12 = arith.constant 0 : index
    %c0_13 = arith.constant 0 : index
    %82 = vector.load %arg4[%c0_12, %c0_13] : memref<4x36xf32, #tpu.memory_space<vmem>>, vector<4x36xf32>
    %cst_14 = arith.constant dense<0.000000e+00> : vector<4x256xf32>
    %83 = tpu.matmul %82, %81, %cst_14 {dimension_numbers = #tpu.dot_dimension_numbers<[1], [0], [0], [1], [0, 0, 1, 1], [], []>} : vector<4x36xf32>, vector<36x256xf32>, vector<4x256xf32> -> vector<4x256xf32>
    %c0_15 = arith.constant 0 : index
    %c0_16 = arith.constant 0 : index
    %84 = vector.load %arg5[%c0_15, %c0_16] : memref<4x1xf32, #tpu.memory_space<vmem>>, vector<4x1xf32>
    %85 = vector.broadcast %84 : vector<4x1xf32> to vector<4x256xf32>
    %86 = arith.addf %83, %85 : vector<4x256xf32>
    %87 = arith.addf %86, %1 : vector<4x256xf32>
    %cst_17 = arith.constant 0.000000e+00 : f32
    %88 = vector.broadcast %cst_17 : f32 to vector<4x256xf32>
    %89 = arith.maximumf %87, %88 : vector<4x256xf32>
    %c0_18 = arith.constant 0 : index
    %c0_19 = arith.constant 0 : index
    %c0_20 = arith.constant 0 : index
    %90 = vector.load %arg7[%c0_18, %c0_19, %c0_20] : memref<1x4x256xf32, #tpu.memory_space<vmem>>, vector<1x4x256xf32>
    %91 = vector.shape_cast %90 : vector<1x4x256xf32> to vector<4x256xf32>
    %92 = vector.shape_cast %89 : vector<4x256xf32> to vector<1x4x256xf32>
    tpu.vector_store %arg7[%c0_18, %c0_19, %c0_20], %92 {strides = array<i32>} : memref<1x4x256xf32, #tpu.memory_space<vmem>>, vector<1x4x256xf32>,
    return
  }
  func.func @transform_0(%arg0: i32) -> (i32, i32, i32) {
    %c0_i32 = arith.constant 0 : i32
    %c0_i32_0 = arith.constant 0 : i32
    %c0_i32_1 = arith.constant 0 : i32
    return %arg0, %c0_i32, %c0_i32_0 : i32, i32, i32
  }
  func.func @transform_1(%arg0: i32) -> (i32, i32) {
    %c0_i32 = arith.constant 0 : i32
    %c0_i32_0 = arith.constant 0 : i32
    %c0_i32_1 = arith.constant 0 : i32
    return %c0_i32, %c0_i32_0 : i32, i32
  }
  func.func @transform_2(%arg0: i32) -> (i32, i32) {
    %c0_i32 = arith.constant 0 : i32
    %c0_i32_0 = arith.constant 0 : i32
    %c0_i32_1 = arith.constant 0 : i32
    return %c0_i32, %c0_i32_0 : i32, i32
  }
  func.func @transform_3(%arg0: i32) -> (i32, i32) {
    %c0_i32 = arith.constant 0 : i32
    %c0_i32_0 = arith.constant 0 : i32
    %c0_i32_1 = arith.constant 0 : i32
    return %c0_i32, %c0_i32_0 : i32, i32
  }
  func.func @transform_4(%arg0: i32) -> (i32, i32) {
    %c0_i32 = arith.constant 0 : i32
    %c0_i32_0 = arith.constant 0 : i32
    %c0_i32_1 = arith.constant 0 : i32
    return %c0_i32, %c0_i32_0 : i32, i32
  }
  func.func @transform_5(%arg0: i32) -> (i32, i32, i32) {
    %c0_i32 = arith.constant 0 : i32
    %c0_i32_0 = arith.constant 0 : i32
    %c0_i32_1 = arith.constant 0 : i32
    %c0_i32_2 = arith.constant 0 : i32
    return %c0_i32, %c0_i32_0, %c0_i32_1 : i32, i32, i32
  }
  func.func @transform_6(%arg0: i32) -> (i32, i32, i32) {
    %c0_i32 = arith.constant 0 : i32
    %c0_i32_0 = arith.constant 0 : i32
    %c0_i32_1 = arith.constant 0 : i32
    return %arg0, %c0_i32, %c0_i32_0 : i32, i32, i32
  }
}

</mosaic_0001>

<llo_original>
// kernel: my_basic_block_forward.1
$region0: #{my_basic_block_forward.1}
  #allocation0 [shape = 'u32[]', space=smem, size = 0x4, offset = 0x4, fixed_abs, tag = 'smem constant byte address 0x4 - core index']
  #allocation1 [shape = 'u32[144,128]{1,0:T(1,128)}', space=vmem, size = 0x12000, scoped, tag = 'internal scratch']
  %s0 = inlined_call_operand.vmem [shape: f32[2,4,256], index: 0, kind: input, shape index: {}]
  %s1 = inlined_call_operand.vmem [shape: f32[4,36], index: 1, kind: input, shape index: {}]
  %s2 = inlined_call_operand.vmem [shape: f32[4,1], index: 2, kind: input, shape index: {}]
  %s3 = inlined_call_operand.vmem [shape: f32[4,36], index: 3, kind: input, shape index: {}]
  %s4 = inlined_call_operand.vmem [shape: f32[4,1], index: 4, kind: input, shape index: {}]
  %s5 = inlined_call_operand.vmem [shape: f32[3,1,256], index: 5, kind: input, shape index: {}]
  %s6 = inlined_call_operand.vmem [shape: f32[2,4,256], index: 6, kind: output, shape index: {}]
  %s7 = sld [smem:[#allocation0]]
  $region57: #{my_basic_block_forward.1} parent=0
    _
  %s9 = ssub.s32 1, %s7
  %s10 = scalar_select 0, %s9, %s7
  loop: start=0, step=1, limit=4
  $region2: #{my_basic_block_forward.1} parent=0 // loop_pre_header
    _
  $region3: #{my_basic_block_forward.1} parent=0 // loop_header
    %s12 = sphi 0, %s16
    %p13 = scmp.ge.s32.totalorder %s12, 4
    %s22 = sphi 0, %s24
    %s25 = sphi 0, %s22
    %s26 = sphi 0, %s25
    %s42 = sphi 0, %s26
    %s46 = sphi 0, %s46
    %s48 = sphi 0, %s46
    %s49 = sphi 0, %s48
    %s63 = sphi 0, %s49
    %s67 = sphi 0, %s67
    %s69 = sphi 0, %s67
    %s70 = sphi 0, %s69
    %s84 = sphi 0, %s70
    %s88 = sphi 0, %s88
    %s90 = sphi 0, %s88
    %s91 = sphi 0, %s90
    %s105 = sphi 0, %s91
    %s109 = sphi 0, %s109
    %s111 = sphi 0, %s109
    %s112 = sphi 0, %s111
    %s126 = sphi 0, %s112
    %s130 = sphi 0, %s130
    %s132 = sphi 0, %s130
    %s133 = sphi 0, %s132
    %s147 = sphi 0, %s133
    %s153 = sphi 0, %s155
    %s156 = sphi 0, %s153
    %s157 = sphi 0, %s156
    %s173 = sphi 0, %s157
  $region4: #{my_basic_block_forward.1} parent=0 // loop_header_branch
    %15 = sbr.rel (%p13) target = $region8
  $region5: #{my_basic_block_forward.1} parent=0 // loop_body
    %s17 = ssub.s32 %s12, 1
    %s18 = ssub.s32 %s12, 2
    %s19 = sadd.s32 %s12, 1
    %s20 = ssub.s32 %s12, %s19
    %p21 = scmp.eq.s32.totalorder %s20, 0
    %s23 = sadd.s32 %s22, 1
    %s24 = scalar_select %p21, %s22, %s23
    %p27 = pneg %p21
    %p28 = scmp.eq.s32.totalorder %s12, 1
    %p29 = por %p27, %p28
    %p30 = scmp.ne.s32.totalorder %s22, %s25
    %p31 = scmp.eq.s32.totalorder %s12, 0
    %p32 = por %p30, %p31
    %p33 = scmp.ne.s32.totalorder %s22, %s25
    %p34 = scmp.eq.s32.totalorder %s17, 1
    %p35 = por %p33, %p34
    %p36 = scmp.ne.s32.totalorder %s25, %s26
    %p37 = scmp.eq.s32.totalorder %s17, 0
    %p38 = por %p36, %p37
    %p39 = scmp.ne.s32.totalorder %s25, %s26
    %p40 = scmp.eq.s32.totalorder %s18, 1
    %p41 = por %p39, %p40
    %p43 = scmp.ne.s32.totalorder %s26, %s42
    %p44 = scmp.eq.s32.totalorder %s18, 0
    %p45 = por %p43, %p44
    %s47 = sadd.s32 %s46, 1
    %p50 = scmp.eq.s32.totalorder %s12, 1
    %p51 = scmp.ne.s32.totalorder %s46, %s48
    %p52 = scmp.eq.s32.totalorder %s12, 0
    %p53 = por %p51, %p52
    %p54 = scmp.ne.s32.totalorder %s46, %s48
    %p55 = scmp.eq.s32.totalorder %s17, 1
    %p56 = por %p54, %p55
    %p57 = scmp.ne.s32.totalorder %s48, %s49
    %p58 = scmp.eq.s32.totalorder %s17, 0
    %p59 = por %p57, %p58
    %p60 = scmp.ne.s32.totalorder %s48, %s49
    %p61 = scmp.eq.s32.totalorder %s18, 1
    %p62 = por %p60, %p61
    %p64 = scmp.ne.s32.totalorder %s49, %s63
    %p65 = scmp.eq.s32.totalorder %s18, 0
    %p66 = por %p64, %p65
    %s68 = sadd.s32 %s67, 1
    %p71 = scmp.eq.s32.totalorder %s12, 1
    %p72 = scmp.ne.s32.totalorder %s67, %s69
    %p73 = scmp.eq.s32.totalorder %s12, 0
    %p74 = por %p72, %p73
    %p75 = scmp.ne.s32.totalorder %s67, %s69
    %p76 = scmp.eq.s32.totalorder %s17, 1
    %p77 = por %p75, %p76
    %p78 = scmp.ne.s32.totalorder %s69, %s70
    %p79 = scmp.eq.s32.totalorder %s17, 0
    %p80 = por %p78, %p79
    %p81 = scmp.ne.s32.totalorder %s69, %s70
    %p82 = scmp.eq.s32.totalorder %s18, 1
    %p83 = por %p81, %p82
    %p85 = scmp.ne.s32.totalorder %s70, %s84
    %p86 = scmp.eq.s32.totalorder %s18, 0
    %p87 = por %p85, %p86
    %s89 = sadd.s32 %s88, 1
    %p92 = scmp.eq.s32.totalorder %s12, 1
    %p93 = scmp.ne.s32.totalorder %s88, %s90
    %p94 = scmp.eq.s32.totalorder %s12, 0
    %p95 = por %p93, %p94
    %p96 = scmp.ne.s32.totalorder %s88, %s90
    %p97 = scmp.eq.s32.totalorder %s17, 1
    %p98 = por %p96, %p97
    %p99 = scmp.ne.s32.totalorder %s90, %s91
    %p100 = scmp.eq.s32.totalorder %s17, 0
    %p101 = por %p99, %p100
    %p102 = scmp.ne.s32.totalorder %s90, %s91
    %p103 = scmp.eq.s32.totalorder %s18, 1
    %p104 = por %p102, %p103
    %p106 = scmp.ne.s32.totalorder %s91, %s105
    %p107 = scmp.eq.s32.totalorder %s18, 0
    %p108 = por %p106, %p107
    %s110 = sadd.s32 %s109, 1
    %p113 = scmp.eq.s32.totalorder %s12, 1
    %p114 = scmp.ne.s32.totalorder %s109, %s111
    %p115 = scmp.eq.s32.totalorder %s12, 0
    %p116 = por %p114, %p115
    %p117 = scmp.ne.s32.totalorder %s109, %s111
    %p118 = scmp.eq.s32.totalorder %s17, 1
    %p119 = por %p117, %p118
    %p120 = scmp.ne.s32.totalorder %s111, %s112
    %p121 = scmp.eq.s32.totalorder %s17, 0
    %p122 = por %p120, %p121
    %p123 = scmp.ne.s32.totalorder %s111, %s112
    %p124 = scmp.eq.s32.totalorder %s18, 1
    %p125 = por %p123, %p124
    %p127 = scmp.ne.s32.totalorder %s112, %s126
    %p128 = scmp.eq.s32.totalorder %s18, 0
    %p129 = por %p127, %p128
    %s131 = sadd.s32 %s130, 1
    %p134 = scmp.eq.s32.totalorder %s12, 1
    %p135 = scmp.ne.s32.totalorder %s130, %s132
    %p136 = scmp.eq.s32.totalorder %s12, 0
    %p137 = por %p135, %p136
    %p138 = scmp.ne.s32.totalorder %s130, %s132
    %p139 = scmp.eq.s32.totalorder %s17, 1
    %p140 = por %p138, %p139
    %p141 = scmp.ne.s32.totalorder %s132, %s133
    %p142 = scmp.eq.s32.totalorder %s17, 0
    %p143 = por %p141, %p142
    %p144 = scmp.ne.s32.totalorder %s132, %s133
    %p145 = scmp.eq.s32.totalorder %s18, 1
    %p146 = por %p144, %p145
    %p148 = scmp.ne.s32.totalorder %s133, %s147
    %p149 = scmp.eq.s32.totalorder %s18, 0
    %p150 = por %p148, %p149
    %s151 = ssub.s32 %s12, %s19
    %p152 = scmp.eq.s32.totalorder %s151, 0
    %s154 = sadd.s32 %s153, 1
    %s155 = scalar_select %p152, %s153, %s154
    %p158 = pneg %p152
    %p159 = scmp.eq.s32.totalorder %s12, 1
    %p160 = por %p158, %p159
    %p161 = scmp.ne.s32.totalorder %s153, %s156
    %p162 = scmp.eq.s32.totalorder %s12, 0
    %p163 = por %p161, %p162
    %p164 = scmp.ne.s32.totalorder %s153, %s156
    %p165 = scmp.eq.s32.totalorder %s17, 1
    %p166 = por %p164, %p165
    %p167 = scmp.ne.s32.totalorder %s156, %s157
    %p168 = scmp.eq.s32.totalorder %s17, 0
    %p169 = por %p167, %p168
    %p170 = scmp.ne.s32.totalorder %s156, %s157
    %p171 = scmp.eq.s32.totalorder %s18, 1
    %p172 = por %p170, %p171
    %p174 = scmp.ne.s32.totalorder %s157, %s173
    %p175 = scmp.eq.s32.totalorder %s18, 0
    %p176 = por %p174, %p175
    %p177 = scmp.le.s32.totalorder 1, %s12
    %p178 = scmp.lt.s32.totalorder %s12, 3
    %p179 = pnand %p177, %p178
    %p180 = pneg %p179
    // Predicated region
    $region9: #{my_basic_block_forward.1} parent=5 // pred_check
      _
    $region10: #{my_basic_block_forward.1} parent=5 // pred_check_branch
      %182 = sbr.rel (%p179) target = $region12
    $region11: #{my_basic_block_forward.1} parent=5 // pred_region
      %s183 = ssub.s32 %s12, 1
      // Predicated region
      $region13: #{my_basic_block_forward.1} parent=11 // pred_check
        %p184 = pneg %p59
      $region14: #{my_basic_block_forward.1} parent=11 // pred_check_branch
        %186 = sbr.rel (%p184) target = $region16
      $region15: #{my_basic_block_forward.1} parent=11 // pred_region
        _
      $region16: #{my_basic_block_forward.1} parent=11 // pred_fallthru
        _
      // Predicated region
      $region17: #{my_basic_block_forward.1} parent=11 // pred_check
        %p187 = pneg %p80
      $region18: #{my_basic_block_forward.1} parent=11 // pred_check_branch
        %189 = sbr.rel (%p187) target = $region20
      $region19: #{my_basic_block_forward.1} parent=11 // pred_region
        _
      $region20: #{my_basic_block_forward.1} parent=11 // pred_fallthru
        _
      // Predicated region
      $region21: #{my_basic_block_forward.1} parent=11 // pred_check
        %p190 = pneg %p101
      $region22: #{my_basic_block_forward.1} parent=11 // pred_check_branch
        %192 = sbr.rel (%p190) target = $region24
      $region23: #{my_basic_block_forward.1} parent=11 // pred_region
        _
      $region24: #{my_basic_block_forward.1} parent=11 // pred_fallthru
        _
      // Predicated region
      $region25: #{my_basic_block_forward.1} parent=11 // pred_check
        %p193 = pneg %p122
      $region26: #{my_basic_block_forward.1} parent=11 // pred_check_branch
        %195 = sbr.rel (%p193) target = $region28
      $region27: #{my_basic_block_forward.1} parent=11 // pred_region
        _
      $region28: #{my_basic_block_forward.1} parent=11 // pred_fallthru
        _
      // Predicated region
      $region29: #{my_basic_block_forward.1} parent=11 // pred_check
        %p196 = pneg %p143
      $region30: #{my_basic_block_forward.1} parent=11 // pred_check_branch
        %198 = sbr.rel (%p196) target = $region32
      $region31: #{my_basic_block_forward.1} parent=11 // pred_region
        _
      $region32: #{my_basic_block_forward.1} parent=11 // pred_fallthru
        _
    $region12: #{my_basic_block_forward.1} parent=5 // pred_fallthru
      _
    %p199 = scmp.lt.s32.totalorder %s12, 2
    // Predicated region
    $region33: #{my_basic_block_forward.1} parent=5 // pred_check
      %p200 = pneg %p199
    $region34: #{my_basic_block_forward.1} parent=5 // pred_check_branch
      %202 = sbr.rel (%p200) target = $region36
    $region35: #{my_basic_block_forward.1} parent=5 // pred_region
      // Predicated region
      $region37: #{my_basic_block_forward.1} parent=35 // pred_check
        %p203 = pneg %p32
      $region38: #{my_basic_block_forward.1} parent=35 // pred_check_branch
        %205 = sbr.rel (%p203) target = $region40
      $region39: #{my_basic_block_forward.1} parent=35 // pred_region
        %p206 = scmp.lt.s32.totalorder %s12, 1
        %s207 = scalar_select %p206, %s12, 1
        %s208 = smul.addr %s207, 2
        %s209 = smul.addr %s208, 4
        %s210 = scalar_lea.vmem %s0, %s209
      $region40: #{my_basic_block_forward.1} parent=35 // pred_fallthru
        _
    $region36: #{my_basic_block_forward.1} parent=5 // pred_fallthru
      _
    %p211 = scmp.le.s32.totalorder 1, %s12
    %p212 = scmp.lt.s32.totalorder %s12, 3
    %p213 = pnand %p211, %p212
    %p214 = pneg %p213
    // Predicated region
    $region41: #{my_basic_block_forward.1} parent=5 // pred_check
      _
    $region42: #{my_basic_block_forward.1} parent=5 // pred_check_branch
      %216 = sbr.rel (%p213) target = $region44
    $region43: #{my_basic_block_forward.1} parent=5 // pred_region
      %s217 = ssub.s32 %s12, 1
      %p218 = scmp.lt.s32.totalorder %s17, 1
      %s219 = scalar_select %p218, %s17, 1
      %s220 = smul.addr %s219, 2
      %s221 = smul.addr %s220, 4
      %s222 = scalar_lea.vmem %s0, %s221
      %p223 = pneg %p38
      %p224 = pneg %p35
      %p225 = pneg %p59
      %p226 = pneg %p56
      %p227 = pneg %p80
      %p228 = pneg %p77
      %p229 = pneg %p101
      %p230 = pneg %p98
      %p231 = pneg %p122
      %p232 = pneg %p119
      %p233 = pneg %p143
      %p234 = pneg %p140
      %p235 = pneg %p169
      %p236 = pneg %p166
      %p237 = scmp.lt.s32.totalorder %s17, 1
      %s238 = scalar_select %p237, %s17, 1
      %s239 = smul.addr %s238, 2
      %s240 = smul.addr %s239, 4
      %s241 = scalar_lea.vmem %s6, %s240
      %p242 = scmp.lt.s32.totalorder %s17, 1
      %s243 = scalar_select %p242, %s17, 1
      %s244 = smul.addr %s243, 2
      %s245 = smul.addr %s244, 4
      %s246 = scalar_lea.vmem %s0, %s245
      %p247 = scmp.lt.s32.totalorder %s17, 1
      %s248 = scalar_select %p247, %s17, 1
      %s249 = smul.addr %s248, 2
      %s250 = smul.addr %s249, 4
      %s251 = scalar_lea.vmem %s6, %s250
      %v252 = vld [vmem:[%s246] sm:$0xff]
      %v253 = vld [vmem:[%s5] sm:$0x3]
      %v254 = vld [vmem:[%s5 + $0x4] sm:$0x3]
      %v256 = vcombine.high %v252, %v252
      %257 = vrot.lane.b32.xlu0 %v252, 17
      %v258 = vpop.permute.xlu0 %257
      %259 = vrot.lane.b32.xlu0 %v256, 17
      %v260 = vpop.permute.xlu0 %259
      %vm261 = vcmask 138240
      %v262 = vsel %vm261, %v258, %v260
      %v266 = vsel %vm261, 0.0, %v258
      %v267 = vsel %vm261, %v260, 0.0
      %v269 = vlaneseq
      %v270 = vshrl.u32 %v269, 7
      %v271 = vsub.s32 0, %v270
      %v272 = vrot.slane %v253, %v271
      %v273 = vlaneseq
      %v274 = vshrl.u32 %v273, 7
      %v275 = vsub.s32 1, %v274
      %v276 = vrot.slane %v253, %v275
      %v279 = vmul.f32 %v266, %v272
      %v280 = vmul.f32 %v262, %v276
      %v282 = vlaneseq
      %v283 = vshrl.u32 %v282, 7
      %v284 = vsub.s32 0, %v283
      %v285 = vrot.slane %v254, %v284
      %v286 = vlaneseq
      %v287 = vshrl.u32 %v286, 7
      %v288 = vsub.s32 1, %v287
      %v289 = vrot.slane %v254, %v288
      %290 = vrot.lane.b32.xlu0 %v285, 2
      %v291 = vpop.permute.xlu0 %290
      %292 = vrot.lane.b32.xlu0 %v289, 2
      %v293 = vpop.permute.xlu0 %292
      %vm294 = vcmask 15360
      %v295 = vsel %vm294, %v291, %v293
      %v299 = vmul.f32 %v266, %v291
      %v300 = vmul.f32 %v262, %v295
      %v301 = vmul.f32 %v267, %v293
      %302 = vrot.lane.b32.xlu0 %v272, 16
      %v303 = vpop.permute.xlu0 %302
      %304 = vrot.lane.b32.xlu0 %v276, 16
      %v305 = vpop.permute.xlu0 %304
      %vm306 = vcmask 130048
      %v307 = vsel %vm306, %v303, %v305
      %v311 = vmul.f32 %v266, %v303
      %v312 = vmul.f32 %v262, %v307
      %v313 = vmul.f32 %v267, %v305
      %314 = vrot.lane.b32.xlu0 %v285, 18
      %v315 = vpop.permute.xlu0 %314
      %316 = vrot.lane.b32.xlu0 %v289, 18
      %v317 = vpop.permute.xlu0 %316
      %vm318 = vcmask 146432
      %v319 = vsel %vm318, %v315, %v317
      %v323 = vmul.f32 %v266, %v315
      %v324 = vmul.f32 %v262, %v319
      %v325 = vmul.f32 %v267, %v317
      %326 = vrot.lane.b32.xlu0 %v272, 32
      %v327 = vpop.permute.xlu0 %326
      %328 = vrot.lane.b32.xlu0 %v276, 32
      %v329 = vpop.permute.xlu0 %328
      %vm330 = vcmask 261120
      %v331 = vsel %vm330, %v327, %v329
      %v335 = vmul.f32 %v266, %v327
      %v336 = vmul.f32 %v262, %v331
      %v337 = vmul.f32 %v267, %v329
      %338 = vrot.lane.b32.xlu0 %v285, 34
      %v339 = vpop.permute.xlu0 %338
      %340 = vrot.lane.b32.xlu0 %v289, 34
      %v341 = vpop.permute.xlu0 %340
      %vm342 = vcmask 277504
      %v343 = vsel %vm342, %v339, %v341
      %v347 = vmul.f32 %v266, %v339
      %v348 = vmul.f32 %v262, %v343
      %v349 = vmul.f32 %v267, %v341
      %v352 = vrot.slane %v266, 4
      %v353 = vrot.slane %v262, 4
      %v354 = vrot.slane %v267, 4
      %355 = vrot.lane.b32.xlu0 %v352, 127
      %v356 = vpop.permute.xlu0 %355
      %357 = vrot.lane.b32.xlu0 %v353, 127
      %v358 = vpop.permute.xlu0 %357
      %359 = vrot.lane.b32.xlu0 %v354, 127
      %v360 = vpop.permute.xlu0 %359
      %vm361 = vcmask 1039360
      %v362 = vsel %vm361, %v356, %v358
      %v363 = vsel %vm361, %v358, %v360
      %369 = vrot.lane.b32.xlu0 %v299, 126
      %v370 = vpop.permute.xlu0 %369
      %371 = vrot.lane.b32.xlu0 %v300, 126
      %v372 = vpop.permute.xlu0 %371
      %373 = vrot.lane.b32.xlu0 %v301, 126
      %v374 = vpop.permute.xlu0 %373
      %vm375 = vcmask 1031168
      %v376 = vsel %vm375, %v370, %v372
      %v377 = vsel %vm375, %v372, %v374
      %v383 = vrot.slane %v311, 4
      %v384 = vrot.slane %v312, 4
      %v385 = vrot.slane %v313, 4
      %386 = vrot.lane.b32.xlu0 %v383, 112
      %v387 = vpop.permute.xlu0 %386
      %388 = vrot.lane.b32.xlu0 %v384, 112
      %v389 = vpop.permute.xlu0 %388
      %390 = vrot.lane.b32.xlu0 %v385, 112
      %v391 = vpop.permute.xlu0 %390
      %vm392 = vcmask 916480
      %v393 = vsel %vm392, %v387, %v389
      %v394 = vsel %vm392, %v389, %v391
      %397 = vrot.lane.b32.xlu0 %v266, 111
      %v398 = vpop.permute.xlu0 %397
      %399 = vrot.lane.b32.xlu0 %v262, 111
      %v400 = vpop.permute.xlu0 %399
      %401 = vrot.lane.b32.xlu0 %v267, 111
      %v402 = vpop.permute.xlu0 %401
      %vm403 = vcmask 908288
      %v404 = vsel %vm403, %v398, %v400
      %v405 = vsel %vm403, %v400, %v402
      %v411 = vrot.slane %v323, 4
      %v412 = vrot.slane %v324, 4
      %v413 = vrot.slane %v325, 4
      %414 = vrot.lane.b32.xlu0 %v411, 110
      %v415 = vpop.permute.xlu0 %414
      %416 = vrot.lane.b32.xlu0 %v412, 110
      %v417 = vpop.permute.xlu0 %416
      %418 = vrot.lane.b32.xlu0 %v413, 110
      %v419 = vpop.permute.xlu0 %418
      %vm420 = vcmask 900096
      %v421 = vsel %vm420, %v415, %v417
      %v422 = vsel %vm420, %v417, %v419
      %428 = vrot.lane.b32.xlu0 %v335, 96
      %v429 = vpop.permute.xlu0 %428
      %430 = vrot.lane.b32.xlu0 %v336, 96
      %v431 = vpop.permute.xlu0 %430
      %432 = vrot.lane.b32.xlu0 %v337, 96
      %v433 = vpop.permute.xlu0 %432
      %vm434 = vcmask 785408
      %v435 = vsel %vm434, %v429, %v431
      %v436 = vsel %vm434, %v431, %v433
      %439 = vrot.lane.b32.xlu0 %v352, 95
      %v440 = vpop.permute.xlu0 %439
      %441 = vrot.lane.b32.xlu0 %v353, 95
      %v442 = vpop.permute.xlu0 %441
      %443 = vrot.lane.b32.xlu0 %v354, 95
      %v444 = vpop.permute.xlu0 %443
      %vm445 = vcmask 777216
      %v446 = vsel %vm445, %v440, %v442
      %v447 = vsel %vm445, %v442, %v444
      %453 = vrot.lane.b32.xlu0 %v347, 94
      %v454 = vpop.permute.xlu0 %453
      %455 = vrot.lane.b32.xlu0 %v348, 94
      %v456 = vpop.permute.xlu0 %455
      %457 = vrot.lane.b32.xlu0 %v349, 94
      %v458 = vpop.permute.xlu0 %457
      %vm459 = vcmask 769024
      %v460 = vsel %vm459, %v454, %v456
      %v461 = vsel %vm459, %v456, %v458
      %vm462 = vcmask 1043456
      %v463 = vsel %vm462, %v279, %v362
      %v464 = vsel %vm462, %v280, %v363
      %v465 = vsel %vm462, %v376, %v393
      %v466 = vsel %vm462, %v377, %v394
      %v467 = vsel %vm462, %v404, %v421
      %v468 = vsel %vm462, %v405, %v422
      %v469 = vsel %vm462, %v435, %v446
      %v470 = vsel %vm462, %v436, %v447
      %v471 = vld [vmem:[%s1] sm:$0xf]
      %v472 = vld [vmem:[%s2] sm:$0xf]
      %474 = vset.pattern.permute.xlu0 0
      %475 = vperm.xlu0 %474, %v472
      %v476 = vpop.permute.xlu0 %475
      %vm478 = vcmask 293888
      %v480 = vsel %vm478, %v471, 0
      %v482 = vsel %vm462, %v460, 0
      %v484 = vsel %vm462, %v461, 0
      %486 = vmatprep.subr.mxu0 %v464
      %487 = vmatpush1.msra.mxu0 %v463
      %488 = vmatprep.subr.mxu0 %v466
      %489 = vmatpush1.msra.mxu0 %v465
      %490 = vmatprep.subr.mxu0 %v468
      %491 = vmatpush1.msra.mxu0 %v467
      %492 = vmatprep.subr.mxu0 %v470
      %493 = vmatpush1.msra.mxu0 %v469
      %494 = vmatprep.subr.mxu0 %v484
      %495 = vmatpush1.msra.mxu0 %v482
      %496 = vmatprep.subr.mxu0 0.0
      %497 = vmatpush1.msra.mxu0 0.0
      %498 = vmatprep.subr.mxu0 0.0
      %499 = vmatpush1.msra.mxu0 0.0
      %500 = vmatprep.subr.mxu0 0.0
      %501 = vmatpush1.msra.mxu0 0.0
      %502 = vmatprep.subr.mxu0 0.0
      %503 = vmatpush1.msra.mxu0 0.0
      %504 = vmatprep.subr.mxu0 0.0
      %505 = vmatpush1.msra.mxu0 0.0
      %506 = vmatprep.subr.mxu0 0.0
      %507 = vmatpush1.msra.mxu0 0.0
      %508 = vmatprep.subr.mxu0 0.0
      %509 = vmatpush1.msra.mxu0 0.0
      %510 = vmatprep.subr.mxu0 0.0
      %511 = vmatpush1.msra.mxu0 0.0
      %512 = vmatprep.subr.mxu0 0.0
      %513 = vmatpush1.msra.mxu0 0.0
      %514 = vmatprep.subr.mxu0 0.0
      %515 = vmatpush1.msra.mxu0 0.0
      %516 = vmatprep.subr.mxu0 0.0
      %517 = vmatpush1.msra.mxu0 0.0
      %518 = vmatprep.subr.mxu0 0.0
      %519 = vmatpush1.msra.mxu0 0.0
      %520 = vmatprep.subr.mxu0 0.0
      %521 = vmatpush1.msra.mxu0 0.0
      %522 = vmatprep.subr.mxu0 0.0
      %523 = vmatpush1.msra.mxu0 0.0
      %524 = vmatprep.subr.mxu0 0.0
      %525 = vmatpush1.msra.mxu0 0.0
      %526 = vmatprep.subr.mxu0 0.0
      %527 = vmatpush1.msra.mxu0 0.0
      %528 = vmatprep.subr.mxu0 0.0
      %529 = vmatpush1.msra.mxu0 0.0
      %530 = vmatprep.subr.mxu0 0.0
      %531 = vmatpush1.msra.mxu0 0.0
      %532 = vmatprep.subr.mxu0 0.0
      %533 = vmatpush1.msra.mxu0 0.0
      %534 = vmatprep.subr.mxu0 0.0
      %535 = vmatpush1.msra.mxu0 0.0
      %536 = vmatprep.subr.mxu0 0.0
      %537 = vmatpush1.msra.mxu0 0.0
      %538 = vmatprep.subr.mxu0 0.0
      %539 = vmatpush1.msra.mxu0 0.0
      %540 = vmatprep.subr.mxu0 0.0
      %541 = vmatpush1.msra.mxu0 0.0
      %542 = vmatprep.subr.mxu0 0.0
      %543 = vmatpush1.msra.mxu0 0.0
      %544 = vmatprep.subr.mxu0 0.0
      %545 = vmatpush1.msra.mxu0 0.0
      %546 = vmatprep.subr.mxu0 0.0
      %547 = vmatpush1.msra.mxu0 0.0
      %548 = vmatprep.subr.mxu0 0.0
      %549 = vmatpush1.msra.mxu0 0.0
      %550 = vmatprep.mubr.f32.mxu0 0.0
      %551 = vmatmul.mubr.f32.gmra.mrb[0].mxu0 %v480
      %v552 = vpop.f32.mrb[0].mxu0
      %v553 = vadd.f32 %v476, %v552
      %v554 = vpop.f32.mrb[0].mxu0
      %v555 = vadd.f32 %v476, %v554
      %556 = vdwg.mxu0
      %v557 = vmax.f32 %v553, 0.0
      %v558 = vmax.f32 %v555, 0.0
      %561 = vrot.lane.b32.xlu0 %v557, 17
      %v562 = vpop.permute.xlu0 %561
      %563 = vrot.lane.b32.xlu0 %v558, 17
      %v564 = vpop.permute.xlu0 %563
      %v565 = vsel %vm261, %v562, %v564
      %v569 = vsel %vm261, 0.0, %v562
      %v570 = vsel %vm261, %v564, 0.0
      %v571 = vmul.f32 %v569, %v272
      %v572 = vmul.f32 %v565, %v276
      %v573 = vmul.f32 %v569, %v291
      %v574 = vmul.f32 %v565, %v295
      %v575 = vmul.f32 %v570, %v293
      %v576 = vmul.f32 %v569, %v303
      %v577 = vmul.f32 %v565, %v307
      %v578 = vmul.f32 %v570, %v305
      %v579 = vmul.f32 %v569, %v315
      %v580 = vmul.f32 %v565, %v319
      %v581 = vmul.f32 %v570, %v317
      %v582 = vmul.f32 %v569, %v327
      %v583 = vmul.f32 %v565, %v331
      %v584 = vmul.f32 %v570, %v329
      %v585 = vmul.f32 %v569, %v339
      %v586 = vmul.f32 %v565, %v343
      %v587 = vmul.f32 %v570, %v341
      %v590 = vrot.slane %v569, 4
      %v591 = vrot.slane %v565, 4
      %v592 = vrot.slane %v570, 4
      %593 = vrot.lane.b32.xlu0 %v590, 127
      %v594 = vpop.permute.xlu0 %593
      %595 = vrot.lane.b32.xlu0 %v591, 127
      %v596 = vpop.permute.xlu0 %595
      %597 = vrot.lane.b32.xlu0 %v592, 127
      %v598 = vpop.permute.xlu0 %597
      %v599 = vsel %vm361, %v594, %v596
      %v600 = vsel %vm361, %v596, %v598
      %606 = vrot.lane.b32.xlu0 %v573, 126
      %v607 = vpop.permute.xlu0 %606
      %608 = vrot.lane.b32.xlu0 %v574, 126
      %v609 = vpop.permute.xlu0 %608
      %610 = vrot.lane.b32.xlu0 %v575, 126
      %v611 = vpop.permute.xlu0 %610
      %v612 = vsel %vm375, %v607, %v609
      %v613 = vsel %vm375, %v609, %v611
      %v619 = vrot.slane %v576, 4
      %v620 = vrot.slane %v577, 4
      %v621 = vrot.slane %v578, 4
      %622 = vrot.lane.b32.xlu0 %v619, 112
      %v623 = vpop.permute.xlu0 %622
      %624 = vrot.lane.b32.xlu0 %v620, 112
      %v625 = vpop.permute.xlu0 %624
      %626 = vrot.lane.b32.xlu0 %v621, 112
      %v627 = vpop.permute.xlu0 %626
      %v628 = vsel %vm392, %v623, %v625
      %v629 = vsel %vm392, %v625, %v627
      %632 = vrot.lane.b32.xlu0 %v569, 111
      %v633 = vpop.permute.xlu0 %632
      %634 = vrot.lane.b32.xlu0 %v565, 111
      %v635 = vpop.permute.xlu0 %634
      %636 = vrot.lane.b32.xlu0 %v570, 111
      %v637 = vpop.permute.xlu0 %636
      %v638 = vsel %vm403, %v633, %v635
      %v639 = vsel %vm403, %v635, %v637
      %v645 = vrot.slane %v579, 4
      %v646 = vrot.slane %v580, 4
      %v647 = vrot.slane %v581, 4
      %648 = vrot.lane.b32.xlu0 %v645, 110
      %v649 = vpop.permute.xlu0 %648
      %650 = vrot.lane.b32.xlu0 %v646, 110
      %v651 = vpop.permute.xlu0 %650
      %652 = vrot.lane.b32.xlu0 %v647, 110
      %v653 = vpop.permute.xlu0 %652
      %v654 = vsel %vm420, %v649, %v651
      %v655 = vsel %vm420, %v651, %v653
      %661 = vrot.lane.b32.xlu0 %v582, 96
      %v662 = vpop.permute.xlu0 %661
      %663 = vrot.lane.b32.xlu0 %v583, 96
      %v664 = vpop.permute.xlu0 %663
      %665 = vrot.lane.b32.xlu0 %v584, 96
      %v666 = vpop.permute.xlu0 %665
      %v667 = vsel %vm434, %v662, %v664
      %v668 = vsel %vm434, %v664, %v666
      %671 = vrot.lane.b32.xlu0 %v590, 95
      %v672 = vpop.permute.xlu0 %671
      %673 = vrot.lane.b32.xlu0 %v591, 95
      %v674 = vpop.permute.xlu0 %673
      %675 = vrot.lane.b32.xlu0 %v592, 95
      %v676 = vpop.permute.xlu0 %675
      %v677 = vsel %vm445, %v672, %v674
      %v678 = vsel %vm445, %v674, %v676
      %684 = vrot.lane.b32.xlu0 %v585, 94
      %v685 = vpop.permute.xlu0 %684
      %686 = vrot.lane.b32.xlu0 %v586, 94
      %v687 = vpop.permute.xlu0 %686
      %688 = vrot.lane.b32.xlu0 %v587, 94
      %v689 = vpop.permute.xlu0 %688
      %v690 = vsel %vm459, %v685, %v687
      %v691 = vsel %vm459, %v687, %v689
      %v692 = vsel %vm462, %v571, %v599
      %v693 = vsel %vm462, %v572, %v600
      %v694 = vsel %vm462, %v612, %v628
      %v695 = vsel %vm462, %v613, %v629
      %v696 = vsel %vm462, %v638, %v654
      %v697 = vsel %vm462, %v639, %v655
      %v698 = vsel %vm462, %v667, %v677
      %v699 = vsel %vm462, %v668, %v678
      %v700 = vld [vmem:[%s3] sm:$0xf]
      %v701 = vld [vmem:[%s4] sm:$0xf]
      %703 = vset.pattern.permute.xlu0 0
      %704 = vperm.xlu0 %703, %v701
      %v705 = vpop.permute.xlu0 %704
      %v708 = vsel %vm478, %v700, 0
      %v710 = vsel %vm462, %v690, 0
      %v712 = vsel %vm462, %v691, 0
      %714 = vmatprep.subr.mxu0 %v693
      %715 = vmatpush1.msra.mxu0 %v692
      %716 = vmatprep.subr.mxu0 %v695
      %717 = vmatpush1.msra.mxu0 %v694
      %718 = vmatprep.subr.mxu0 %v697
      %719 = vmatpush1.msra.mxu0 %v696
      %720 = vmatprep.subr.mxu0 %v699
      %721 = vmatpush1.msra.mxu0 %v698
      %722 = vmatprep.subr.mxu0 %v712
      %723 = vmatpush1.msra.mxu0 %v710
      %724 = vmatprep.subr.mxu0 0.0
      %725 = vmatpush1.msra.mxu0 0.0
      %726 = vmatprep.subr.mxu0 0.0
      %727 = vmatpush1.msra.mxu0 0.0
      %728 = vmatprep.subr.mxu0 0.0
      %729 = vmatpush1.msra.mxu0 0.0
      %730 = vmatprep.subr.mxu0 0.0
      %731 = vmatpush1.msra.mxu0 0.0
      %732 = vmatprep.subr.mxu0 0.0
      %733 = vmatpush1.msra.mxu0 0.0
      %734 = vmatprep.subr.mxu0 0.0
      %735 = vmatpush1.msra.mxu0 0.0
      %736 = vmatprep.subr.mxu0 0.0
      %737 = vmatpush1.msra.mxu0 0.0
      %738 = vmatprep.subr.mxu0 0.0
      %739 = vmatpush1.msra.mxu0 0.0
      %740 = vmatprep.subr.mxu0 0.0
      %741 = vmatpush1.msra.mxu0 0.0
      %742 = vmatprep.subr.mxu0 0.0
      %743 = vmatpush1.msra.mxu0 0.0
      %744 = vmatprep.subr.mxu0 0.0
      %745 = vmatpush1.msra.mxu0 0.0
      %746 = vmatprep.subr.mxu0 0.0
      %747 = vmatpush1.msra.mxu0 0.0
      %748 = vmatprep.subr.mxu0 0.0
      %749 = vmatpush1.msra.mxu0 0.0
      %750 = vmatprep.subr.mxu0 0.0
      %751 = vmatpush1.msra.mxu0 0.0
      %752 = vmatprep.subr.mxu0 0.0
      %753 = vmatpush1.msra.mxu0 0.0
      %754 = vmatprep.subr.mxu0 0.0
      %755 = vmatpush1.msra.mxu0 0.0
      %756 = vmatprep.subr.mxu0 0.0
      %757 = vmatpush1.msra.mxu0 0.0
      %758 = vmatprep.subr.mxu0 0.0
      %759 = vmatpush1.msra.mxu0 0.0
      %760 = vmatprep.subr.mxu0 0.0
      %761 = vmatpush1.msra.mxu0 0.0
      %762 = vmatprep.subr.mxu0 0.0
      %763 = vmatpush1.msra.mxu0 0.0
      %764 = vmatprep.subr.mxu0 0.0
      %765 = vmatpush1.msra.mxu0 0.0
      %766 = vmatprep.subr.mxu0 0.0
      %767 = vmatpush1.msra.mxu0 0.0
      %768 = vmatprep.subr.mxu0 0.0
      %769 = vmatpush1.msra.mxu0 0.0
      %770 = vmatprep.subr.mxu0 0.0
      %771 = vmatpush1.msra.mxu0 0.0
      %772 = vmatprep.subr.mxu0 0.0
      %773 = vmatpush1.msra.mxu0 0.0
      %774 = vmatprep.subr.mxu0 0.0
      %775 = vmatpush1.msra.mxu0 0.0
      %776 = vmatprep.subr.mxu0 0.0
      %777 = vmatpush1.msra.mxu0 0.0
      %778 = vmatprep.mubr.f32.mxu0 0.0
      %779 = vmatmul.mubr.f32.gmra.mrb[0].mxu0 %v708
      %v780 = vpop.f32.mrb[0].mxu0
      %v781 = vadd.f32 %v705, %v780
      %v782 = vpop.f32.mrb[0].mxu0
      %v783 = vadd.f32 %v705, %v782
      %784 = vdwg.mxu0
      %v786 = vadd.f32 %v781, %v252
      %v787 = vadd.f32 %v783, %v256
      %v788 = vmax.f32 %v786, 0.0
      %v789 = vmax.f32 %v787, 0.0
      %v792 = vcombine.low %v788, %v789
      %794 = vst [vmem:[%s251] sm:$0xff] %v792
      %p795 = scmp.lt.s32.totalorder %s17, 1
      %s796 = scalar_select %p795, %s17, 1
      %s797 = smul.addr %s796, 2
      %s798 = smul.addr %s797, 4
      %s799 = scalar_lea.vmem %s6, %s798
      // Predicated region
      $region45: #{my_basic_block_forward.1} parent=43 // pred_check
        %p800 = pneg %p166
      $region46: #{my_basic_block_forward.1} parent=43 // pred_check_branch
        %802 = sbr.rel (%p800) target = $region48
      $region47: #{my_basic_block_forward.1} parent=43 // pred_region
        _
      $region48: #{my_basic_block_forward.1} parent=43 // pred_fallthru
        _
    $region44: #{my_basic_block_forward.1} parent=5 // pred_fallthru
      _
    %p803 = scmp.le.s32.totalorder 2, %s12
    // Predicated region
    $region49: #{my_basic_block_forward.1} parent=5 // pred_check
      %p804 = pneg %p803
    $region50: #{my_basic_block_forward.1} parent=5 // pred_check_branch
      %806 = sbr.rel (%p804) target = $region52
    $region51: #{my_basic_block_forward.1} parent=5 // pred_region
      %s807 = ssub.s32 %s12, 2
      // Predicated region
      $region53: #{my_basic_block_forward.1} parent=51 // pred_check
        %p808 = pneg %p172
      $region54: #{my_basic_block_forward.1} parent=51 // pred_check_branch
        %810 = sbr.rel (%p808) target = $region56
      $region55: #{my_basic_block_forward.1} parent=51 // pred_region
        %p811 = scmp.lt.s32.totalorder %s18, 1
        %s812 = scalar_select %p811, %s18, 1
        %s813 = smul.addr %s812, 2
        %s814 = smul.addr %s813, 4
        %s815 = scalar_lea.vmem %s6, %s814
      $region56: #{my_basic_block_forward.1} parent=51 // pred_fallthru
        _
    $region52: #{my_basic_block_forward.1} parent=5 // pred_fallthru
      _
  $region6: #{my_basic_block_forward.1} parent=0 // loop_footer
    %s16 = sadd.s32 1, %s12
  $region7: #{my_basic_block_forward.1} parent=0 // loop_footer_branch
    %11 = sbr.rel target = $region3
  $region8: #{my_basic_block_forward.1} parent=0 // loop_exit
    _

</llo_original>
